<compile_context>
chip_gen: v5e
topology: v5e:2x2
jax: 0.10.0
libtpu: 0.0.40
codegen_flags: <defaults>
</compile_context>

<pallas_src>
import functools

import jax
import jax.numpy as jnp
from jax.experimental import pallas as pl
from jax.experimental.pallas import tpu as pltpu


def _ffn_kernel(x_ref, w1t_ref, b1_ref, w2t_ref, b2_ref, o_ref):
    """One (C, TILE_HW) pixel tile of one batch element (NCHW layout).

    x_ref  : (C, T)       input pixels: channels on sublanes, pixels on lanes
    w1t_ref: (hidden, C)  BN1-scale-folded conv1 weight, transposed (bf16)
    b1_ref : (hidden, 1)  BN1 folded bias (f32)
    w2t_ref: (C, hidden)  BN2-scale-folded conv2 weight, transposed (bf16)
    b2_ref : (C, 1)       BN2 folded bias (f32)
    o_ref  : (C, T)       output tile, written back in NCHW (lane-dense)
    """
    cd = w1t_ref.dtype
    x = x_ref[...].astype(cd)
    # conv1(1x1) + BN1 + ReLU  -> (hidden, T); f32 accumulate, f32 epilogue
    h = jnp.dot(w1t_ref[...], x, preferred_element_type=jnp.float32)
    h = jnp.maximum(h + b1_ref[...], 0.0)
    # conv2(1x1) + BN2 + ReLU  -> (C, T)
    y = jnp.dot(w2t_ref[...], h.astype(cd), preferred_element_type=jnp.float32)
    o_ref[...] = jnp.maximum(y + b2_ref[...], 0.0).astype(o_ref.dtype)


@functools.partial(jax.jit, static_argnames=("tile_hw", "compute_dtype"))
def cnn_feedforward_pallas(x_nchw, params, *, tile_hw=512,
                           compute_dtype=jnp.bfloat16):
    """x_nchw: (N, C, H, W). Returns (N, C, H, W) in x_nchw.dtype."""
    w1, s1, b1, w2, s2, b2 = params
    N, C, H, W = x_nchw.shape
    hidden = w1.shape[1]
    HW = H * W

    # Fold eval-mode BN scale into the conv weights and pre-transpose so the
    # kernel computes (hidden, C) @ (C, T) on the NCHW layout directly.
    w1t = (w1 * s1[None, :]).T.astype(compute_dtype)        # (hidden, C)
    w2t = (w2 * s2[None, :]).T.astype(compute_dtype)        # (C, hidden)
    b1c = b1.reshape(hidden, 1).astype(jnp.float32)
    b2c = b2.reshape(C, 1).astype(jnp.float32)

    # Pixel axis last = lane axis.  Pure reshape, no data movement.
    x3 = x_nchw.reshape(N, C, HW)

    # Lane-dense tiling along the pixel axis (multiple of 128); pad only if
    # H*W itself is not 128-aligned.
    tile_hw = max(128, (tile_hw // 128) * 128)
    HW_pad = pl.cdiv(HW, 128) * 128
    tile_hw = min(tile_hw, HW_pad)
    HW_pad = pl.cdiv(HW_pad, tile_hw) * tile_hw
    if HW_pad != HW:
        x3 = jnp.pad(x3, ((0, 0), (0, 0), (0, HW_pad - HW)))

    grid = (N, HW_pad // tile_hw)

    out = pl.pallas_call(
        _ffn_kernel,
        out_shape=jax.ShapeDtypeStruct((N, C, HW_pad), x_nchw.dtype),
        grid_spec=pltpu.PrefetchScalarGridSpec(
            num_scalar_prefetch=0,
            grid=grid,
            in_specs=[
                pl.BlockSpec((None, C, tile_hw), lambda n, j: (n, 0, j)),  # x
                pl.BlockSpec((hidden, C), lambda n, j: (0, 0)),            # W1^T*s1
                pl.BlockSpec((hidden, 1), lambda n, j: (0, 0)),            # b1
                pl.BlockSpec((C, hidden), lambda n, j: (0, 0)),            # W2^T*s2
                pl.BlockSpec((C, 1), lambda n, j: (0, 0)),                 # b2
            ],
            out_specs=pl.BlockSpec((None, C, tile_hw), lambda n, j: (n, 0, j)),
        ),
        compiler_params=pltpu.CompilerParams(
            dimension_semantics=("parallel", "parallel"),
            vmem_limit_bytes=32 * 1024 * 1024,
        ),
    )(x3, w1t, b1c, w2t, b2c)

    if HW_pad != HW:
        out = out[:, :, :HW]
    return out.reshape(N, C, H, W)


def make_params(key, dim, hidden_dim, eps=1e-5):
    """Deterministic synthetic parameters (eval-mode BN folded to scale/bias)."""
    k1, k2, k3, k4, k5, k6, k7, k8 = jax.random.split(key, 8)

    w1 = jax.random.normal(k1, (dim, hidden_dim), jnp.float32) * (1.0 / jnp.sqrt(dim))
    w2 = jax.random.normal(k2, (hidden_dim, dim), jnp.float32) * (1.0 / jnp.sqrt(hidden_dim))

    g1 = 1.0 + 0.1 * jax.random.normal(k3, (hidden_dim,), jnp.float32)
    be1 = 0.1 * jax.random.normal(k4, (hidden_dim,), jnp.float32)
    rm1 = 0.05 * jax.random.normal(k5, (hidden_dim,), jnp.float32)
    rv1 = 1.0 + 0.1 * jax.random.uniform(k6, (hidden_dim,), jnp.float32)

    g2 = 1.0 + 0.1 * jax.random.normal(k7, (dim,), jnp.float32)
    be2 = 0.1 * jax.random.normal(k8, (dim,), jnp.float32)
    rm2 = jnp.zeros((dim,), jnp.float32)
    rv2 = jnp.ones((dim,), jnp.float32)

    s1 = g1 / jnp.sqrt(rv1 + eps)
    b1 = be1 - rm1 * s1
    s2 = g2 / jnp.sqrt(rv2 + eps)
    b2 = be2 - rm2 * s2
    return (w1, s1, b1, w2, s2, b2)


def reference_forward(x_nchw, params, compute_dtype=jnp.float32):
    """Plain-JAX reference of the folded forward (same math as the module).

    With compute_dtype=jnp.bfloat16 it mirrors the kernel's operand casts
    (f32 accumulation, f32 epilogue) for a tight numerical comparison.
    """
    w1, s1, b1, w2, s2, b2 = params
    N, C, H, W = x_nchw.shape
    w1t = (w1 * s1[None, :]).T.astype(compute_dtype)     # (hidden, C)
    w2t = (w2 * s2[None, :]).T.astype(compute_dtype)     # (C, hidden)
    x3 = x_nchw.reshape(N, C, H * W).astype(compute_dtype)
    h = jnp.einsum("hc,nct->nht", w1t, x3, preferred_element_type=jnp.float32)
    h = jnp.maximum(h + b1[None, :, None], 0.0)
    y = jnp.einsum("ch,nht->nct", w2t, h.astype(compute_dtype),
                   preferred_element_type=jnp.float32)
    y = jnp.maximum(y + b2[None, :, None], 0.0)
    return y.reshape(N, C, H, W).astype(x_nchw.dtype)


if __name__ == "__main__":
    dim, hidden_dim = 32, 64
    N, H, W = 2, 16, 16

    key = jax.random.PRNGKey(0)
    kx, kp = jax.random.split(key)
    x = jax.random.normal(kx, (N, dim, H, W), jnp.float32)
    params = make_params(kp, dim, hidden_dim)

    out = cnn_feedforward_pallas(x, params)
    out = jax.block_until_ready(out)

    assert out.shape == (N, dim, H, W)

    # Tight check vs. a reference that uses the same bf16 operand casts.
    ref_bf16 = reference_forward(x, params, compute_dtype=jnp.bfloat16)
    assert jnp.allclose(out, ref_bf16, atol=2e-3, rtol=2e-3), "mismatch vs bf16 reference"

    # Loose check vs. the full-f32 module semantics (bf16 operand rounding).
    ref_f32 = reference_forward(x, params, compute_dtype=jnp.float32)
    assert jnp.allclose(out, ref_f32, atol=1e-1, rtol=1e-1), "mismatch vs f32 reference"

    print("KERNEL_OK")
</pallas_src>

<mosaic_0001>
module attributes {stable_mosaic.version = 11 : i64} {
  func.func @_ffn_kernel(%arg0: i32, %arg1: i32, %arg2: memref<1x32x256xf32, #tpu.memory_space<vmem>>, %arg3: memref<64x32xbf16, #tpu.memory_space<vmem>>, %arg4: memref<64x1xf32, #tpu.memory_space<vmem>>, %arg5: memref<32x64xbf16, #tpu.memory_space<vmem>>, %arg6: memref<32x1xf32, #tpu.memory_space<vmem>>, %arg7: memref<1x32x256xf32, #tpu.memory_space<vmem>>) attributes {dimension_semantics = [#tpu.dimension_semantics<parallel>, #tpu.dimension_semantics<parallel>], iteration_bounds = array<i64: 2, 1>, scalar_prefetch = 0 : i64, scratch_operands = 0 : i64, tpu.core_type = #tpu.core_type<tc>, window_params = [{transform_indices = @transform_0, window_bounds = array<i64: 1, 32, 256>}, {pipeline_mode = #tpu.pipeline_mode<synchronous>, transform_indices = @transform_1, window_bounds = array<i64: 64, 32>}, {pipeline_mode = #tpu.pipeline_mode<synchronous>, transform_indices = @transform_2, window_bounds = array<i64: 64, 1>}, {pipeline_mode = #tpu.pipeline_mode<synchronous>, transform_indices = @transform_3, window_bounds = array<i64: 32, 64>}, {pipeline_mode = #tpu.pipeline_mode<synchronous>, transform_indices = @transform_4, window_bounds = array<i64: 32, 1>}, {transform_indices = @transform_5, window_bounds = array<i64: 1, 32, 256>}]} {
    %c0 = arith.constant 0 : index
    %c0_0 = arith.constant 0 : index
    %c0_1 = arith.constant 0 : index
    %0 = vector.load %arg2[%c0, %c0_0, %c0_1] : memref<1x32x256xf32, #tpu.memory_space<vmem>>, vector<1x32x256xf32>
    %1 = vector.shape_cast %0 : vector<1x32x256xf32> to vector<32x256xf32>
    %2 = arith.truncf %1 : vector<32x256xf32> to vector<32x256xbf16>
    %c0_2 = arith.constant 0 : index
    %c0_3 = arith.constant 0 : index
    %3 = vector.load %arg3[%c0_2, %c0_3] : memref<64x32xbf16, #tpu.memory_space<vmem>>, vector<64x32xbf16>
    %cst = arith.constant dense<0.000000e+00> : vector<64x256xf32>
    %4 = tpu.matmul %3, %2, %cst {dimension_numbers = #tpu.dot_dimension_numbers<[1], [0], [0], [1], [0, 0, 1, 1], [], []>} : vector<64x32xbf16>, vector<32x256xbf16>, vector<64x256xf32> -> vector<64x256xf32>
    %c0_4 = arith.constant 0 : index
    %c0_5 = arith.constant 0 : index
    %5 = vector.load %arg4[%c0_4, %c0_5] : memref<64x1xf32, #tpu.memory_space<vmem>>, vector<64x1xf32>
    %6 = vector.broadcast %5 : vector<64x1xf32> to vector<64x256xf32>
    %7 = arith.addf %4, %6 : vector<64x256xf32>
    %cst_6 = arith.constant 0.000000e+00 : f32
    %8 = vector.broadcast %cst_6 : f32 to vector<64x256xf32>
    %9 = arith.maximumf %7, %8 : vector<64x256xf32>
    %c0_7 = arith.constant 0 : index
    %c0_8 = arith.constant 0 : index
    %10 = vector.load %arg5[%c0_7, %c0_8] : memref<32x64xbf16, #tpu.memory_space<vmem>>, vector<32x64xbf16>
    %11 = arith.truncf %9 : vector<64x256xf32> to vector<64x256xbf16>
    %cst_9 = arith.constant dense<0.000000e+00> : vector<32x256xf32>
    %12 = tpu.matmul %10, %11, %cst_9 {dimension_numbers = #tpu.dot_dimension_numbers<[1], [0], [0], [1], [0, 0, 1, 1], [], []>} : vector<32x64xbf16>, vector<64x256xbf16>, vector<32x256xf32> -> vector<32x256xf32>
    %c0_10 = arith.constant 0 : index
    %c0_11 = arith.constant 0 : index
    %13 = vector.load %arg6[%c0_10, %c0_11] : memref<32x1xf32, #tpu.memory_space<vmem>>, vector<32x1xf32>
    %14 = vector.broadcast %13 : vector<32x1xf32> to vector<32x256xf32>
    %15 = arith.addf %12, %14 : vector<32x256xf32>
    %cst_12 = arith.constant 0.000000e+00 : f32
    %16 = vector.broadcast %cst_12 : f32 to vector<32x256xf32>
    %17 = arith.maximumf %15, %16 : vector<32x256xf32>
    %c0_13 = arith.constant 0 : index
    %c0_14 = arith.constant 0 : index
    %c0_15 = arith.constant 0 : index
    %18 = vector.load %arg7[%c0_13, %c0_14, %c0_15] : memref<1x32x256xf32, #tpu.memory_space<vmem>>, vector<1x32x256xf32>
    %19 = vector.shape_cast %18 : vector<1x32x256xf32> to vector<32x256xf32>
    %20 = vector.shape_cast %17 : vector<32x256xf32> to vector<1x32x256xf32>
    tpu.vector_store %arg7[%c0_13, %c0_14, %c0_15], %20 {strides = array<i32>} : memref<1x32x256xf32, #tpu.memory_space<vmem>>, vector<1x32x256xf32>,
    return
  }
  func.func @transform_0(%arg0: i32, %arg1: i32) -> (i32, i32, i32) {
    %c0_i32 = arith.constant 0 : i32
    %c0_i32_0 = arith.constant 0 : i32
    return %arg0, %c0_i32, %arg1 : i32, i32, i32
  }
  func.func @transform_1(%arg0: i32, %arg1: i32) -> (i32, i32) {
    %c0_i32 = arith.constant 0 : i32
    %c0_i32_0 = arith.constant 0 : i32
    %c0_i32_1 = arith.constant 0 : i32
    return %c0_i32, %c0_i32_0 : i32, i32
  }
  func.func @transform_2(%arg0: i32, %arg1: i32) -> (i32, i32) {
    %c0_i32 = arith.constant 0 : i32
    %c0_i32_0 = arith.constant 0 : i32
    %c0_i32_1 = arith.constant 0 : i32
    return %c0_i32, %c0_i32_0 : i32, i32
  }
  func.func @transform_3(%arg0: i32, %arg1: i32) -> (i32, i32) {
    %c0_i32 = arith.constant 0 : i32
    %c0_i32_0 = arith.constant 0 : i32
    %c0_i32_1 = arith.constant 0 : i32
    return %c0_i32, %c0_i32_0 : i32, i32
  }
  func.func @transform_4(%arg0: i32, %arg1: i32) -> (i32, i32) {
    %c0_i32 = arith.constant 0 : i32
    %c0_i32_0 = arith.constant 0 : i32
    %c0_i32_1 = arith.constant 0 : i32
    return %c0_i32, %c0_i32_0 : i32, i32
  }
  func.func @transform_5(%arg0: i32, %arg1: i32) -> (i32, i32, i32) {
    %c0_i32 = arith.constant 0 : i32
    %c0_i32_0 = arith.constant 0 : i32
    return %arg0, %c0_i32, %arg1 : i32, i32, i32
  }
}

</mosaic_0001>

<llo_original>
// kernel: cnn_feedforward_pallas.1
$region0: #{cnn_feedforward_pallas.1}
  #allocation0 [shape = 'u32[]', space=smem, size = 0x4, offset = 0x4, fixed_abs, tag = 'smem constant byte address 0x4 - core index']
  #allocation1 [shape = 'u32[72,128]{1,0:T(1,128)}', space=vmem, size = 0x9000, scoped, tag = 'internal scratch']
  %s0 = inlined_call_operand.vmem [shape: f32[2,32,256], index: 0, kind: input, shape index: {}]
  %s1 = inlined_call_operand.vmem [shape: bf16[64,32], index: 1, kind: input, shape index: {}]
  %s2 = inlined_call_operand.vmem [shape: f32[64,1], index: 2, kind: input, shape index: {}]
  %s3 = inlined_call_operand.vmem [shape: bf16[32,64], index: 3, kind: input, shape index: {}]
  %s4 = inlined_call_operand.vmem [shape: f32[32,1], index: 4, kind: input, shape index: {}]
  %s5 = inlined_call_operand.vmem [shape: f32[2,32,256], index: 5, kind: output, shape index: {}]
  %s6 = sld [smem:[#allocation0]]
  $region53: #{cnn_feedforward_pallas.1} parent=0
    _
  %s8 = ssub.s32 1, %s6
  %s9 = scalar_select 0, %s8, %s6
  loop: start=0, step=1, limit=4
  $region2: #{cnn_feedforward_pallas.1} parent=0 // loop_pre_header
    _
  $region3: #{cnn_feedforward_pallas.1} parent=0 // loop_header
    %s11 = sphi 0, %s15
    %p12 = scmp.ge.s32.totalorder %s11, 4
    %s18 = sphi 0, %s30
    %s19 = sphi 0, %s26
    %s20 = sphi 0, %s18
    %s21 = sphi 0, %s19
    %s22 = sphi 0, %s20
    %s23 = sphi 0, %s21
    %s35 = sphi 0, %s37
    %s38 = sphi 0, %s35
    %s39 = sphi 0, %s38
    %s55 = sphi 0, %s39
    %s59 = sphi 0, %s59
    %s61 = sphi 0, %s59
    %s62 = sphi 0, %s61
    %s76 = sphi 0, %s62
    %s80 = sphi 0, %s80
    %s82 = sphi 0, %s80
    %s83 = sphi 0, %s82
    %s97 = sphi 0, %s83
    %s101 = sphi 0, %s101
    %s103 = sphi 0, %s101
    %s104 = sphi 0, %s103
    %s118 = sphi 0, %s104
    %s122 = sphi 0, %s122
    %s124 = sphi 0, %s122
    %s125 = sphi 0, %s124
    %s139 = sphi 0, %s125
    %s147 = sphi 0, %s149
    %s150 = sphi 0, %s147
    %s151 = sphi 0, %s150
    %s167 = sphi 0, %s151
  $region4: #{cnn_feedforward_pallas.1} parent=0 // loop_header_branch
    %14 = sbr.rel (%p12) target = $region8
  $region5: #{cnn_feedforward_pallas.1} parent=0 // loop_body
    %s16 = ssub.s32 %s11, 1
    %s17 = ssub.s32 %s11, 2
    %s24 = sadd.s32 1, %s19
    %p25 = scmp.ge.s32.totalorder %s24, 1
    %s26 = scalar_select %p25, 0, %s24
    %s27 = sadd.s32 1, %s18
    %s28 = scalar_select %p25, %s27, %s18
    %p29 = scmp.ge.s32.totalorder %s28, 2
    %s30 = scalar_select %p29, 0, %s28
    %s31 = ssub.s32 %s18, %s30
    %s32 = ssub.s32 %s19, %s26
    %s33 = sor.u32 %s31, %s32
    %p34 = scmp.eq.s32.totalorder %s33, 0
    %s36 = sadd.s32 %s35, 1
    %s37 = scalar_select %p34, %s35, %s36
    %p40 = pneg %p34
    %p41 = scmp.eq.s32.totalorder %s11, 1
    %p42 = por %p40, %p41
    %p43 = scmp.ne.s32.totalorder %s35, %s38
    %p44 = scmp.eq.s32.totalorder %s11, 0
    %p45 = por %p43, %p44
    %p46 = scmp.ne.s32.totalorder %s35, %s38
    %p47 = scmp.eq.s32.totalorder %s16, 1
    %p48 = por %p46, %p47
    %p49 = scmp.ne.s32.totalorder %s38, %s39
    %p50 = scmp.eq.s32.totalorder %s16, 0
    %p51 = por %p49, %p50
    %p52 = scmp.ne.s32.totalorder %s38, %s39
    %p53 = scmp.eq.s32.totalorder %s17, 1
    %p54 = por %p52, %p53
    %p56 = scmp.ne.s32.totalorder %s39, %s55
    %p57 = scmp.eq.s32.totalorder %s17, 0
    %p58 = por %p56, %p57
    %s60 = sadd.s32 %s59, 1
    %p63 = scmp.eq.s32.totalorder %s11, 1
    %p64 = scmp.ne.s32.totalorder %s59, %s61
    %p65 = scmp.eq.s32.totalorder %s11, 0
    %p66 = por %p64, %p65
    %p67 = scmp.ne.s32.totalorder %s59, %s61
    %p68 = scmp.eq.s32.totalorder %s16, 1
    %p69 = por %p67, %p68
    %p70 = scmp.ne.s32.totalorder %s61, %s62
    %p71 = scmp.eq.s32.totalorder %s16, 0
    %p72 = por %p70, %p71
    %p73 = scmp.ne.s32.totalorder %s61, %s62
    %p74 = scmp.eq.s32.totalorder %s17, 1
    %p75 = por %p73, %p74
    %p77 = scmp.ne.s32.totalorder %s62, %s76
    %p78 = scmp.eq.s32.totalorder %s17, 0
    %p79 = por %p77, %p78
    %s81 = sadd.s32 %s80, 1
    %p84 = scmp.eq.s32.totalorder %s11, 1
    %p85 = scmp.ne.s32.totalorder %s80, %s82
    %p86 = scmp.eq.s32.totalorder %s11, 0
    %p87 = por %p85, %p86
    %p88 = scmp.ne.s32.totalorder %s80, %s82
    %p89 = scmp.eq.s32.totalorder %s16, 1
    %p90 = por %p88, %p89
    %p91 = scmp.ne.s32.totalorder %s82, %s83
    %p92 = scmp.eq.s32.totalorder %s16, 0
    %p93 = por %p91, %p92
    %p94 = scmp.ne.s32.totalorder %s82, %s83
    %p95 = scmp.eq.s32.totalorder %s17, 1
    %p96 = por %p94, %p95
    %p98 = scmp.ne.s32.totalorder %s83, %s97
    %p99 = scmp.eq.s32.totalorder %s17, 0
    %p100 = por %p98, %p99
    %s102 = sadd.s32 %s101, 1
    %p105 = scmp.eq.s32.totalorder %s11, 1
    %p106 = scmp.ne.s32.totalorder %s101, %s103
    %p107 = scmp.eq.s32.totalorder %s11, 0
    %p108 = por %p106, %p107
    %p109 = scmp.ne.s32.totalorder %s101, %s103
    %p110 = scmp.eq.s32.totalorder %s16, 1
    %p111 = por %p109, %p110
    %p112 = scmp.ne.s32.totalorder %s103, %s104
    %p113 = scmp.eq.s32.totalorder %s16, 0
    %p114 = por %p112, %p113
    %p115 = scmp.ne.s32.totalorder %s103, %s104
    %p116 = scmp.eq.s32.totalorder %s17, 1
    %p117 = por %p115, %p116
    %p119 = scmp.ne.s32.totalorder %s104, %s118
    %p120 = scmp.eq.s32.totalorder %s17, 0
    %p121 = por %p119, %p120
    %s123 = sadd.s32 %s122, 1
    %p126 = scmp.eq.s32.totalorder %s11, 1
    %p127 = scmp.ne.s32.totalorder %s122, %s124
    %p128 = scmp.eq.s32.totalorder %s11, 0
    %p129 = por %p127, %p128
    %p130 = scmp.ne.s32.totalorder %s122, %s124
    %p131 = scmp.eq.s32.totalorder %s16, 1
    %p132 = por %p130, %p131
    %p133 = scmp.ne.s32.totalorder %s124, %s125
    %p134 = scmp.eq.s32.totalorder %s16, 0
    %p135 = por %p133, %p134
    %p136 = scmp.ne.s32.totalorder %s124, %s125
    %p137 = scmp.eq.s32.totalorder %s17, 1
    %p138 = por %p136, %p137
    %p140 = scmp.ne.s32.totalorder %s125, %s139
    %p141 = scmp.eq.s32.totalorder %s17, 0
    %p142 = por %p140, %p141
    %s143 = ssub.s32 %s18, %s30
    %s144 = ssub.s32 %s19, %s26
    %s145 = sor.u32 %s143, %s144
    %p146 = scmp.eq.s32.totalorder %s145, 0
    %s148 = sadd.s32 %s147, 1
    %s149 = scalar_select %p146, %s147, %s148
    %p152 = pneg %p146
    %p153 = scmp.eq.s32.totalorder %s11, 1
    %p154 = por %p152, %p153
    %p155 = scmp.ne.s32.totalorder %s147, %s150
    %p156 = scmp.eq.s32.totalorder %s11, 0
    %p157 = por %p155, %p156
    %p158 = scmp.ne.s32.totalorder %s147, %s150
    %p159 = scmp.eq.s32.totalorder %s16, 1
    %p160 = por %p158, %p159
    %p161 = scmp.ne.s32.totalorder %s150, %s151
    %p162 = scmp.eq.s32.totalorder %s16, 0
    %p163 = por %p161, %p162
    %p164 = scmp.ne.s32.totalorder %s150, %s151
    %p165 = scmp.eq.s32.totalorder %s17, 1
    %p166 = por %p164, %p165
    %p168 = scmp.ne.s32.totalorder %s151, %s167
    %p169 = scmp.eq.s32.totalorder %s17, 0
    %p170 = por %p168, %p169
    %p171 = scmp.le.s32.totalorder 1, %s11
    %p172 = scmp.lt.s32.totalorder %s11, 3
    %p173 = pnand %p171, %p172
    %p174 = pneg %p173
    // Predicated region
    $region9: #{cnn_feedforward_pallas.1} parent=5 // pred_check
      _
    $region10: #{cnn_feedforward_pallas.1} parent=5 // pred_check_branch
      %176 = sbr.rel (%p173) target = $region12
    $region11: #{cnn_feedforward_pallas.1} parent=5 // pred_region
      %s177 = ssub.s32 %s11, 1
      // Predicated region
      $region13: #{cnn_feedforward_pallas.1} parent=11 // pred_check
        %p178 = pneg %p72
      $region14: #{cnn_feedforward_pallas.1} parent=11 // pred_check_branch
        %180 = sbr.rel (%p178) target = $region16
      $region15: #{cnn_feedforward_pallas.1} parent=11 // pred_region
        _
      $region16: #{cnn_feedforward_pallas.1} parent=11 // pred_fallthru
        _
      // Predicated region
      $region17: #{cnn_feedforward_pallas.1} parent=11 // pred_check
        %p181 = pneg %p93
      $region18: #{cnn_feedforward_pallas.1} parent=11 // pred_check_branch
        %183 = sbr.rel (%p181) target = $region20
      $region19: #{cnn_feedforward_pallas.1} parent=11 // pred_region
        _
      $region20: #{cnn_feedforward_pallas.1} parent=11 // pred_fallthru
        _
      // Predicated region
      $region21: #{cnn_feedforward_pallas.1} parent=11 // pred_check
        %p184 = pneg %p114
      $region22: #{cnn_feedforward_pallas.1} parent=11 // pred_check_branch
        %186 = sbr.rel (%p184) target = $region24
      $region23: #{cnn_feedforward_pallas.1} parent=11 // pred_region
        _
      $region24: #{cnn_feedforward_pallas.1} parent=11 // pred_fallthru
        _
      // Predicated region
      $region25: #{cnn_feedforward_pallas.1} parent=11 // pred_check
        %p187 = pneg %p135
      $region26: #{cnn_feedforward_pallas.1} parent=11 // pred_check_branch
        %189 = sbr.rel (%p187) target = $region28
      $region27: #{cnn_feedforward_pallas.1} parent=11 // pred_region
        _
      $region28: #{cnn_feedforward_pallas.1} parent=11 // pred_fallthru
        _
    $region12: #{cnn_feedforward_pallas.1} parent=5 // pred_fallthru
      _
    %p190 = scmp.lt.s32.totalorder %s11, 2
    // Predicated region
    $region29: #{cnn_feedforward_pallas.1} parent=5 // pred_check
      %p191 = pneg %p190
    $region30: #{cnn_feedforward_pallas.1} parent=5 // pred_check_branch
      %193 = sbr.rel (%p191) target = $region32
    $region31: #{cnn_feedforward_pallas.1} parent=5 // pred_region
      // Predicated region
      $region33: #{cnn_feedforward_pallas.1} parent=31 // pred_check
        %p194 = pneg %p45
      $region34: #{cnn_feedforward_pallas.1} parent=31 // pred_check_branch
        %196 = sbr.rel (%p194) target = $region36
      $region35: #{cnn_feedforward_pallas.1} parent=31 // pred_region
        %s197 = smul.u32 2, %s19
        %p198 = scmp.lt.s32.totalorder %s18, 1
        %s199 = scalar_select %p198, %s18, 1
        %p200 = scmp.lt.s32.totalorder %s197, 1
        %s201 = scalar_select %p200, %s197, 1
        %s202 = smul.addr %s199, 8
        %s203 = sadd.s32 %s201, %s202
        %s204 = smul.addr %s203, 8
        %s205 = scalar_lea.vmem %s0, %s204
        %s206 = smul.u32 2, %s19
      $region36: #{cnn_feedforward_pallas.1} parent=31 // pred_fallthru
        _
    $region32: #{cnn_feedforward_pallas.1} parent=5 // pred_fallthru
      _
    %p207 = scmp.le.s32.totalorder 1, %s11
    %p208 = scmp.lt.s32.totalorder %s11, 3
    %p209 = pnand %p207, %p208
    %p210 = pneg %p209
    // Predicated region
    $region37: #{cnn_feedforward_pallas.1} parent=5 // pred_check
      _
    $region38: #{cnn_feedforward_pallas.1} parent=5 // pred_check_branch
      %212 = sbr.rel (%p209) target = $region40
    $region39: #{cnn_feedforward_pallas.1} parent=5 // pred_region
      %s213 = ssub.s32 %s11, 1
      %s214 = smul.u32 2, %s21
      %p215 = scmp.lt.s32.totalorder %s20, 1
      %s216 = scalar_select %p215, %s20, 1
      %p217 = scmp.lt.s32.totalorder %s214, 1
      %s218 = scalar_select %p217, %s214, 1
      %s219 = smul.addr %s216, 8
      %s220 = sadd.s32 %s218, %s219
      %s221 = smul.addr %s220, 8
      %s222 = scalar_lea.vmem %s0, %s221
      %p223 = pneg %p51
      %p224 = pneg %p48
      %p225 = pneg %p72
      %p226 = pneg %p69
      %p227 = pneg %p93
      %p228 = pneg %p90
      %p229 = pneg %p114
      %p230 = pneg %p111
      %p231 = pneg %p135
      %p232 = pneg %p132
      %p233 = pneg %p163
      %p234 = pneg %p160
      %s235 = smul.u32 2, %s21
      %p236 = scmp.lt.s32.totalorder %s20, 1
      %s237 = scalar_select %p236, %s20, 1
      %p238 = scmp.lt.s32.totalorder %s235, 1
      %s239 = scalar_select %p238, %s235, 1
      %s240 = smul.addr %s237, 8
      %s241 = sadd.s32 %s239, %s240
      %s242 = smul.addr %s241, 8
      %s243 = scalar_lea.vmem %s5, %s242
      %s244 = smul.u32 2, %s21
      %p245 = scmp.lt.s32.totalorder %s20, 1
      %s246 = scalar_select %p245, %s20, 1
      %p247 = scmp.lt.s32.totalorder %s244, 1
      %s248 = scalar_select %p247, %s244, 1
      %s249 = smul.addr %s246, 8
      %s250 = sadd.s32 %s248, %s249
      %s251 = smul.addr %s250, 8
      %s252 = scalar_lea.vmem %s0, %s251
      %s253 = smul.u32 2, %s21
      %s254 = smul.u32 2, %s21
      %p255 = scmp.lt.s32.totalorder %s20, 1
      %s256 = scalar_select %p255, %s20, 1
      %p257 = scmp.lt.s32.totalorder %s254, 1
      %s258 = scalar_select %p257, %s254, 1
      %s259 = smul.addr %s256, 8
      %s260 = sadd.s32 %s258, %s259
      %s261 = smul.addr %s260, 8
      %s262 = scalar_lea.vmem %s5, %s261
      %s263 = smul.u32 2, %s21
      %v265 = vld [vmem:[%s252] sm:$0xff]
      %v266 = vld [vmem:[%s252 + $0x8] sm:$0xff]
      %v267 = vld [vmem:[%s252 + $0x10] sm:$0xff]
      %v268 = vld [vmem:[%s252 + $0x18] sm:$0xff]
      %v269 = vld [vmem:[%s252 + $0x20] sm:$0xff]
      %v270 = vld [vmem:[%s252 + $0x28] sm:$0xff]
      %v271 = vld [vmem:[%s252 + $0x30] sm:$0xff]
      %v272 = vld [vmem:[%s252 + $0x38] sm:$0xff]
      %v273 = vpack.c.bf16 %v267, %v265
      %v274 = vpack.c.bf16 %v268, %v266
      %v275 = vpack.c.bf16 %v271, %v269
      %v276 = vpack.c.bf16 %v272, %v270
      %v277 = vld [vmem:[%s1] sm:$0xf]
      %v278 = vld [vmem:[%s1 + $0x4] sm:$0xf]
      %v279 = vld [vmem:[%s1 + $0x8] sm:$0xf]
      %v280 = vld [vmem:[%s1 + $0xc] sm:$0xf]
      %v281 = vld [vmem:[%s1 + $0x10] sm:$0xf]
      %v282 = vld [vmem:[%s1 + $0x14] sm:$0xf]
      %v283 = vld [vmem:[%s1 + $0x18] sm:$0xf]
      %v284 = vld [vmem:[%s1 + $0x1c] sm:$0xf]
      %v285 = vld [vmem:[%s2] sm:$0xff]
      %v286 = vld [vmem:[%s2 + $0x8] sm:$0xff]
      %v287 = vld [vmem:[%s2 + $0x10] sm:$0xff]
      %v288 = vld [vmem:[%s2 + $0x18] sm:$0xff]
      %v289 = vld [vmem:[%s2 + $0x20] sm:$0xff]
      %v290 = vld [vmem:[%s2 + $0x28] sm:$0xff]
      %v291 = vld [vmem:[%s2 + $0x30] sm:$0xff]
      %v292 = vld [vmem:[%s2 + $0x38] sm:$0xff]
      %294 = vset.pattern.permute.xlu0 0
      %295 = vperm.xlu0 %294, %v285
      %v296 = vpop.permute.xlu0 %295
      %299 = vset.pattern.permute.xlu0 0
      %300 = vperm.xlu0 %299, %v286
      %v301 = vpop.permute.xlu0 %300
      %304 = vset.pattern.permute.xlu0 0
      %305 = vperm.xlu0 %304, %v287
      %v306 = vpop.permute.xlu0 %305
      %309 = vset.pattern.permute.xlu0 0
      %310 = vperm.xlu0 %309, %v288
      %v311 = vpop.permute.xlu0 %310
      %314 = vset.pattern.permute.xlu0 0
      %315 = vperm.xlu0 %314, %v289
      %v316 = vpop.permute.xlu0 %315
      %319 = vset.pattern.permute.xlu0 0
      %320 = vperm.xlu0 %319, %v290
      %v321 = vpop.permute.xlu0 %320
      %324 = vset.pattern.permute.xlu0 0
      %325 = vperm.xlu0 %324, %v291
      %v326 = vpop.permute.xlu0 %325
      %329 = vset.pattern.permute.xlu0 0
      %330 = vperm.xlu0 %329, %v292
      %v331 = vpop.permute.xlu0 %330
      %v341 = vunpack.c.l.b16 %v277
      %v342 = vunpack.c.l.b16 %v278
      %v343 = vunpack.c.l.b16 %v279
      %v344 = vunpack.c.l.b16 %v280
      %v345 = vunpack.c.l.b16 %v281
      %v346 = vunpack.c.l.b16 %v282
      %v347 = vunpack.c.l.b16 %v283
      %v348 = vunpack.c.l.b16 %v284
      %v349 = vpack.c.b16 %v342, %v341
      %v350 = vpack.c.b16 %v344, %v343
      %v351 = vpack.c.b16 %v346, %v345
      %v352 = vpack.c.b16 %v348, %v347
      %vm353 = vcmask 261120
      %v355 = vsel %vm353, %v349, 0
      %v358 = vsel %vm353, %v350, 0
      %v361 = vsel %vm353, %v351, 0
      %v364 = vsel %vm353, %v352, 0
      %366 = vmatpush.bf16.msra.mxu0 0
      %367 = vmatpush.bf16.msra.mxu0 0
      %368 = vmatpush.bf16.msra.mxu0 0
      %369 = vmatpush.bf16.msra.mxu0 0
      %370 = vmatpush.bf16.msra.mxu0 0
      %371 = vmatpush.bf16.msra.mxu0 0
      %372 = vmatpush.bf16.msra.mxu0 %v275
      %373 = vmatpush.bf16.msra.mxu0 %v273
      %374 = vmatmul.bf16.gmra.mxu0 %v355
      %v375 = vpop.f32.mrf.mxu0
      %v376 = vadd.f32 %v296, %v375
      %v377 = vpop.f32.mrf.mxu0
      %v378 = vadd.f32 %v301, %v377
      %379 = vmatmul.bf16.gmra.mxu0 %v358
      %v380 = vpop.f32.mrf.mxu0
      %v381 = vadd.f32 %v306, %v380
      %v382 = vpop.f32.mrf.mxu0
      %v383 = vadd.f32 %v311, %v382
      %384 = vmatmul.bf16.gmra.mxu0 %v361
      %v385 = vpop.f32.mrf.mxu0
      %v386 = vadd.f32 %v316, %v385
      %v387 = vpop.f32.mrf.mxu0
      %v388 = vadd.f32 %v321, %v387
      %389 = vmatmul.bf16.gmra.mxu0 %v364
      %v390 = vpop.f32.mrf.mxu0
      %v391 = vadd.f32 %v326, %v390
      %v392 = vpop.f32.mrf.mxu0
      %v393 = vadd.f32 %v331, %v392
      %394 = vdwg.mxu0
      %395 = vmatpush.bf16.msra.mxu0 0
      %396 = vmatpush.bf16.msra.mxu0 0
      %397 = vmatpush.bf16.msra.mxu0 0
      %398 = vmatpush.bf16.msra.mxu0 0
      %399 = vmatpush.bf16.msra.mxu0 0
      %400 = vmatpush.bf16.msra.mxu0 0
      %401 = vmatpush.bf16.msra.mxu0 %v276
      %402 = vmatpush.bf16.msra.mxu0 %v274
      %403 = vmatmul.bf16.gmra.mxu0 %v355
      %v404 = vpop.f32.mrf.mxu0
      %v405 = vadd.f32 %v296, %v404
      %v406 = vpop.f32.mrf.mxu0
      %v407 = vadd.f32 %v301, %v406
      %408 = vmatmul.bf16.gmra.mxu0 %v358
      %v409 = vpop.f32.mrf.mxu0
      %v410 = vadd.f32 %v306, %v409
      %v411 = vpop.f32.mrf.mxu0
      %v412 = vadd.f32 %v311, %v411
      %413 = vmatmul.bf16.gmra.mxu0 %v361
      %v414 = vpop.f32.mrf.mxu0
      %v415 = vadd.f32 %v316, %v414
      %v416 = vpop.f32.mrf.mxu0
      %v417 = vadd.f32 %v321, %v416
      %418 = vmatmul.bf16.gmra.mxu0 %v364
      %v419 = vpop.f32.mrf.mxu0
      %v420 = vadd.f32 %v326, %v419
      %v421 = vpop.f32.mrf.mxu0
      %v422 = vadd.f32 %v331, %v421
      %423 = vdwg.mxu0
      %v424 = vmax.f32 %v376, 0.0
      %v425 = vmax.f32 %v405, 0.0
      %v426 = vmax.f32 %v378, 0.0
      %v427 = vmax.f32 %v407, 0.0
      %v428 = vmax.f32 %v381, 0.0
      %v429 = vmax.f32 %v410, 0.0
      %v430 = vmax.f32 %v383, 0.0
      %v431 = vmax.f32 %v412, 0.0
      %v432 = vmax.f32 %v386, 0.0
      %v433 = vmax.f32 %v415, 0.0
      %v434 = vmax.f32 %v388, 0.0
      %v435 = vmax.f32 %v417, 0.0
      %v436 = vmax.f32 %v391, 0.0
      %v437 = vmax.f32 %v420, 0.0
      %v438 = vmax.f32 %v393, 0.0
      %v439 = vmax.f32 %v422, 0.0
      %v440 = vld [vmem:[%s3] sm:$0xf]
      %v441 = vld [vmem:[%s3 + $0x4] sm:$0xf]
      %v442 = vld [vmem:[%s3 + $0x8] sm:$0xf]
      %v443 = vld [vmem:[%s3 + $0xc] sm:$0xf]
      %v444 = vpack.c.bf16 %v426, %v424
      %v445 = vpack.c.bf16 %v427, %v425
      %v446 = vpack.c.bf16 %v430, %v428
      %v447 = vpack.c.bf16 %v431, %v429
      %v448 = vpack.c.bf16 %v434, %v432
      %v449 = vpack.c.bf16 %v435, %v433
      %v450 = vpack.c.bf16 %v438, %v436
      %v451 = vpack.c.bf16 %v439, %v437
      %v452 = vld [vmem:[%s4] sm:$0xff]
      %v453 = vld [vmem:[%s4 + $0x8] sm:$0xff]
      %v454 = vld [vmem:[%s4 + $0x10] sm:$0xff]
      %v455 = vld [vmem:[%s4 + $0x18] sm:$0xff]
      %457 = vset.pattern.permute.xlu0 0
      %458 = vperm.xlu0 %457, %v452
      %v459 = vpop.permute.xlu0 %458
      %462 = vset.pattern.permute.xlu0 0
      %463 = vperm.xlu0 %462, %v453
      %v464 = vpop.permute.xlu0 %463
      %467 = vset.pattern.permute.xlu0 0
      %468 = vperm.xlu0 %467, %v454
      %v469 = vpop.permute.xlu0 %468
      %472 = vset.pattern.permute.xlu0 0
      %473 = vperm.xlu0 %472, %v455
      %v474 = vpop.permute.xlu0 %473
      %v480 = vunpack.c.l.b16 %v440
      %v481 = vunpack.c.l.b16 %v441
      %v482 = vunpack.c.l.b16 %v442
      %v483 = vunpack.c.l.b16 %v443
      %v484 = vpack.c.b16 %v481, %v480
      %v485 = vpack.c.b16 %v483, %v482
      %vm486 = vcmask 523264
      %v488 = vsel %vm486, %v484, 0
      %v491 = vsel %vm486, %v485, 0
      %493 = vmatpush.bf16.msra.mxu0 0
      %494 = vmatpush.bf16.msra.mxu0 0
      %495 = vmatpush.bf16.msra.mxu0 0
      %496 = vmatpush.bf16.msra.mxu0 0
      %497 = vmatpush.bf16.msra.mxu0 %v450
      %498 = vmatpush.bf16.msra.mxu0 %v448
      %499 = vmatpush.bf16.msra.mxu0 %v446
      %500 = vmatpush.bf16.msra.mxu0 %v444
      %501 = vmatmul.bf16.gmra.mxu0 %v488
      %v502 = vpop.f32.mrf.mxu0
      %v503 = vadd.f32 %v459, %v502
      %v504 = vpop.f32.mrf.mxu0
      %v505 = vadd.f32 %v464, %v504
      %506 = vmatmul.bf16.gmra.mxu0 %v491
      %v507 = vpop.f32.mrf.mxu0
      %v508 = vadd.f32 %v469, %v507
      %v509 = vpop.f32.mrf.mxu0
      %v510 = vadd.f32 %v474, %v509
      %511 = vdwg.mxu0
      %512 = vmatpush.bf16.msra.mxu0 0
      %513 = vmatpush.bf16.msra.mxu0 0
      %514 = vmatpush.bf16.msra.mxu0 0
      %515 = vmatpush.bf16.msra.mxu0 0
      %516 = vmatpush.bf16.msra.mxu0 %v451
      %517 = vmatpush.bf16.msra.mxu0 %v449
      %518 = vmatpush.bf16.msra.mxu0 %v447
      %519 = vmatpush.bf16.msra.mxu0 %v445
      %520 = vmatmul.bf16.gmra.mxu0 %v488
      %v521 = vpop.f32.mrf.mxu0
      %v522 = vadd.f32 %v459, %v521
      %v523 = vpop.f32.mrf.mxu0
      %v524 = vadd.f32 %v464, %v523
      %525 = vmatmul.bf16.gmra.mxu0 %v491
      %v526 = vpop.f32.mrf.mxu0
      %v527 = vadd.f32 %v469, %v526
      %v528 = vpop.f32.mrf.mxu0
      %v529 = vadd.f32 %v474, %v528
      %530 = vdwg.mxu0
      %v531 = vmax.f32 %v503, 0.0
      %v532 = vmax.f32 %v522, 0.0
      %v533 = vmax.f32 %v505, 0.0
      %v534 = vmax.f32 %v524, 0.0
      %v535 = vmax.f32 %v508, 0.0
      %v536 = vmax.f32 %v527, 0.0
      %v537 = vmax.f32 %v510, 0.0
      %v538 = vmax.f32 %v529, 0.0
      %539 = vst [vmem:[%s262] sm:$0xff] %v531
      %540 = vst [vmem:[%s262 + $0x8] sm:$0xff] %v532
      %541 = vst [vmem:[%s262 + $0x10] sm:$0xff] %v533
      %542 = vst [vmem:[%s262 + $0x18] sm:$0xff] %v534
      %543 = vst [vmem:[%s262 + $0x20] sm:$0xff] %v535
      %544 = vst [vmem:[%s262 + $0x28] sm:$0xff] %v536
      %545 = vst [vmem:[%s262 + $0x30] sm:$0xff] %v537
      %546 = vst [vmem:[%s262 + $0x38] sm:$0xff] %v538
      %s547 = smul.u32 2, %s21
      %p548 = scmp.lt.s32.totalorder %s20, 1
      %s549 = scalar_select %p548, %s20, 1
      %p550 = scmp.lt.s32.totalorder %s547, 1
      %s551 = scalar_select %p550, %s547, 1
      %s552 = smul.addr %s549, 8
      %s553 = sadd.s32 %s551, %s552
      %s554 = smul.addr %s553, 8
      %s555 = scalar_lea.vmem %s5, %s554
      // Predicated region
      $region41: #{cnn_feedforward_pallas.1} parent=39 // pred_check
        %p556 = pneg %p160
      $region42: #{cnn_feedforward_pallas.1} parent=39 // pred_check_branch
        %558 = sbr.rel (%p556) target = $region44
      $region43: #{cnn_feedforward_pallas.1} parent=39 // pred_region
        %s559 = smul.u32 2, %s21
      $region44: #{cnn_feedforward_pallas.1} parent=39 // pred_fallthru
        _
    $region40: #{cnn_feedforward_pallas.1} parent=5 // pred_fallthru
      _
    %p560 = scmp.le.s32.totalorder 2, %s11
    // Predicated region
    $region45: #{cnn_feedforward_pallas.1} parent=5 // pred_check
      %p561 = pneg %p560
    $region46: #{cnn_feedforward_pallas.1} parent=5 // pred_check_branch
      %563 = sbr.rel (%p561) target = $region48
    $region47: #{cnn_feedforward_pallas.1} parent=5 // pred_region
      %s564 = ssub.s32 %s11, 2
      // Predicated region
      $region49: #{cnn_feedforward_pallas.1} parent=47 // pred_check
        %p565 = pneg %p166
      $region50: #{cnn_feedforward_pallas.1} parent=47 // pred_check_branch
        %567 = sbr.rel (%p565) target = $region52
      $region51: #{cnn_feedforward_pallas.1} parent=47 // pred_region
        %s568 = smul.u32 2, %s23
        %p569 = scmp.lt.s32.totalorder %s22, 1
        %s570 = scalar_select %p569, %s22, 1
        %p571 = scmp.lt.s32.totalorder %s568, 1
        %s572 = scalar_select %p571, %s568, 1
        %s573 = smul.addr %s570, 8
        %s574 = sadd.s32 %s572, %s573
        %s575 = smul.addr %s574, 8
        %s576 = scalar_lea.vmem %s5, %s575
      $region52: #{cnn_feedforward_pallas.1} parent=47 // pred_fallthru
        _
    $region48: #{cnn_feedforward_pallas.1} parent=5 // pred_fallthru
      _
  $region6: #{cnn_feedforward_pallas.1} parent=0 // loop_footer
    %s15 = sadd.s32 1, %s11
  $region7: #{cnn_feedforward_pallas.1} parent=0 // loop_footer_branch
    %10 = sbr.rel target = $region3
  $region8: #{cnn_feedforward_pallas.1} parent=0 // loop_exit
    _

</llo_original>
